<compile_context>
chip_gen: v5e
topology: v5e:2x2
jax: 0.10.0
libtpu: 0.0.40
codegen_flags: <defaults>
</compile_context>

<pallas_src>
import numpy as np
import jax
import jax.numpy as jnp
from jax.experimental import pallas as pl
from jax.experimental.pallas import tpu as pltpu

LANE = 128
SUBLANE = 8


def _round_up(x, m):
    return (x + m - 1) // m * m


def _cdiv(a, b):
    return -(-a // b)


# ---------------------------------------------------------------------------
# Pallas kernel:  out = ReLU( ReLU(x) @ W1 + b1 ) @ W2 + b2      (single fused pass)
# ---------------------------------------------------------------------------
def _relation_mlp_kernel(x_ref, w1_ref, b1_ref, w2_ref, b2_ref, o_ref):
    # First nn.ReLU() in f32, then cast to bf16 for the MXU (cast fused in-kernel).
    x = jnp.maximum(x_ref[...], 0.0).astype(jnp.bfloat16)
    # Linear(F, 256): bf16 operands, f32 accumulation on the MXU.
    h = jnp.dot(x, w1_ref[...], preferred_element_type=jnp.float32)
    h = jnp.maximum(h + b1_ref[...], 0.0)                      # + bias, second nn.ReLU() (f32)
    h = h.astype(w2_ref.dtype)                                  # back to bf16 for the MXU
    # Linear(256, Cp): lane-padded class dim -> unmasked vst.
    y = jnp.dot(h, w2_ref[...], preferred_element_type=jnp.float32)
    o_ref[...] = y + b2_ref[...]


def _choose_row_tiling(B):
    """Return (Mp, tm): padded row count and row-tile size."""
    if B < 16:
        # Latency path: a single tile equal to the full (unpadded) batch.  Block shapes that
        # equal the full array dims are exempt from the (8,128) divisibility rule, so no pad
        # and no post-kernel row slice are needed.
        return B, B
    Mp8 = _round_up(B, SUBLANE)
    # >= 2 grid steps (lets the "parallel" axis use both v7x TensorCores), tiles capped at
    # 256 rows (fills the 256-row MXU on v6e/v7x), minimal padding slack.
    n_tiles = max(2, _cdiv(Mp8, 256))
    tm = _round_up(_cdiv(Mp8, n_tiles), SUBLANE)
    Mp = _round_up(Mp8, tm)
    return Mp, tm


def relation_module_forward(x, w1_bf16, b1_f32, w2p_bf16, b2p_f32, num_class):
    """x: (B, num_frames, D) float32.  Returns (B, num_class) float32."""
    B = x.shape[0]
    F = x.shape[1] * x.shape[2]
    assert F == w1_bf16.shape[0]
    H = w1_bf16.shape[1]
    Cp = w2p_bf16.shape[1]

    # Flatten frames into the feature (lane) axis; stays f32 — ReLU + bf16 cast are in-kernel.
    x_flat = x.reshape(B, F)

    Mp, tm = _choose_row_tiling(B)
    if Mp != B:
        x_flat = jnp.pad(x_flat, ((0, Mp - B), (0, 0)))
    n_tiles = Mp // tm

    # VMEM budget: double-buffered x/out tiles + single-buffered resident weights (+ headroom).
    vmem_bytes = (2 * tm * F * 4          # x tiles (f32, double-buffered)
                  + F * H * 2 + H * 4     # W1 (bf16, single-buffered) + b1
                  + H * Cp * 2 + Cp * 4   # W2 (bf16, single-buffered) + b2
                  + 2 * tm * Cp * 4)      # out tiles (f32, double-buffered)
    vmem_limit = min(96 << 20, max(16 << 20, (vmem_bytes * 3) // 2 + (1 << 20)))

    cost = pl.CostEstimate(
        flops=2 * Mp * F * H + 2 * Mp * H * Cp,
        transcendentals=0,
        bytes_accessed=Mp * F * 4 + F * H * 2 + H * 4 + H * Cp * 2 + Cp * 4 + Mp * Cp * 4)

    # Constant index_map -> revisited every grid step -> no benefit from double buffering.
    resident = pl.Buffered(1)

    out = pl.pallas_call(
        _relation_mlp_kernel,
        out_shape=jax.ShapeDtypeStruct((Mp, Cp), jnp.float32),
        grid_spec=pltpu.PrefetchScalarGridSpec(
            num_scalar_prefetch=0,
            grid=(n_tiles,),
            in_specs=[
                pl.BlockSpec((tm, F), lambda i: (i, 0)),                           # activations
                pl.BlockSpec((F, H), lambda i: (0, 0), pipeline_mode=resident),    # W1 (resident)
                pl.BlockSpec((1, H), lambda i: (0, 0), pipeline_mode=resident),    # b1
                pl.BlockSpec((H, Cp), lambda i: (0, 0), pipeline_mode=resident),   # W2 (lane-padded)
                pl.BlockSpec((1, Cp), lambda i: (0, 0), pipeline_mode=resident),   # b2 (lane-padded)
            ],
            out_specs=pl.BlockSpec((tm, Cp), lambda i: (i, 0)),                    # lane-dense stores
        ),
        compiler_params=pltpu.CompilerParams(
            dimension_semantics=("parallel",),
            vmem_limit_bytes=int(vmem_limit)),
        cost_estimate=cost,
    )(x_flat, w1_bf16, b1_f32, w2p_bf16, b2p_f32)

    # Minimal post-kernel slicing: only emit slices that are not identities.
    if Mp != B:
        out = out[:B]
    if Cp != num_class:
        out = out[:, :num_class]
    return out


# ---------------------------------------------------------------------------
# Module (JAX port of RelationModule)
# ---------------------------------------------------------------------------
class RelationModule:
    NUM_BOTTLENECK = 256

    def __init__(self, img_feature_dim, num_frames, num_class, key):
        self.num_frames = num_frames
        self.num_class = num_class
        self.img_feature_dim = img_feature_dim

        F = num_frames * img_feature_dim
        H = self.NUM_BOTTLENECK
        Cp = _round_up(num_class, LANE)

        k1, k2, k3, k4 = jax.random.split(key, 4)
        w1 = jax.random.normal(k1, (F, H), jnp.float32) * 0.02
        b1 = jax.random.normal(k2, (H,), jnp.float32) * 0.02
        w2 = jax.random.normal(k3, (H, num_class), jnp.float32) * 0.02
        b2 = jax.random.normal(k4, (num_class,), jnp.float32) * 0.02

        # Cast / pad ONCE at init: bf16 weights for the MXU; class dim padded to 128 lanes
        # with zero columns / zero bias so padded lanes never leak into the sliced output.
        self.w1_bf16 = w1.astype(jnp.bfloat16)
        self.b1 = b1.reshape(1, H)
        self.w2p_bf16 = jnp.zeros((H, Cp), jnp.bfloat16).at[:, :num_class].set(
            w2.astype(jnp.bfloat16))
        self.b2p = jnp.zeros((1, Cp), jnp.float32).at[0, :num_class].set(b2)

    def __call__(self, x):
        return relation_module_forward(
            x, self.w1_bf16, self.b1, self.w2p_bf16, self.b2p, self.num_class)

    # Host-side (numpy) reference mirroring the kernel's ReLU->bf16-cast / f32-accumulate
    # numerics, for verification.
    def reference(self, x):
        B = x.shape[0]
        F = self.num_frames * self.img_feature_dim
        xf = np.asarray(x, np.float32).reshape(B, F)
        xb = np.asarray(jnp.asarray(np.maximum(xf, 0.0))
                        .astype(jnp.bfloat16).astype(jnp.float32))
        w1 = np.asarray(self.w1_bf16.astype(jnp.float32))
        b1 = np.asarray(self.b1)[0]
        h = np.maximum(xb @ w1 + b1, 0.0)
        hb = np.asarray(jnp.asarray(h).astype(jnp.bfloat16).astype(jnp.float32))
        w2 = np.asarray(self.w2p_bf16[:, :self.num_class].astype(jnp.float32))
        b2 = np.asarray(self.b2p[0, :self.num_class])
        return hb @ w2 + b2


if __name__ == "__main__":
    key = jax.random.PRNGKey(0)
    k_param, k_data = jax.random.split(key)

    B, num_frames, img_feature_dim = 2, 8, 32
    num_class = 16

    module = RelationModule(img_feature_dim, num_frames, num_class, k_param)

    x = jax.random.normal(k_data, (B, num_frames, img_feature_dim), jnp.float32)

    out = module(x)
    out = jax.block_until_ready(out)

    ref = module.reference(x)

    assert out.shape == (B, num_class)
    np.testing.assert_allclose(np.asarray(out), np.asarray(ref), rtol=1e-3, atol=1e-3)

    print("KERNEL_OK")
</pallas_src>

<mosaic_0001>
module attributes {stable_mosaic.version = 11 : i64} {
  func.func @_relation_mlp_kernel(%arg0: i32, %arg1: memref<2x256xf32, #tpu.memory_space<vmem>>, %arg2: memref<256x256xbf16, #tpu.memory_space<vmem>>, %arg3: memref<1x256xf32, #tpu.memory_space<vmem>>, %arg4: memref<256x128xbf16, #tpu.memory_space<vmem>>, %arg5: memref<1x128xf32, #tpu.memory_space<vmem>>, %arg6: memref<2x128xf32, #tpu.memory_space<vmem>>) attributes {dimension_semantics = [#tpu.dimension_semantics<parallel>], iteration_bounds = array<i64: 1>, scalar_prefetch = 0 : i64, scratch_operands = 0 : i64, tpu.core_type = #tpu.core_type<tc>, window_params = [{transform_indices = @transform_0, window_bounds = array<i64: 2, 256>}, {pipeline_mode = #tpu.pipeline_mode<synchronous>, transform_indices = @transform_1, window_bounds = array<i64: 256, 256>}, {pipeline_mode = #tpu.pipeline_mode<synchronous>, transform_indices = @transform_2, window_bounds = array<i64: 1, 256>}, {pipeline_mode = #tpu.pipeline_mode<synchronous>, transform_indices = @transform_3, window_bounds = array<i64: 256, 128>}, {pipeline_mode = #tpu.pipeline_mode<synchronous>, transform_indices = @transform_4, window_bounds = array<i64: 1, 128>}, {transform_indices = @transform_5, window_bounds = array<i64: 2, 128>}]} {
    %c0 = arith.constant 0 : index
    %c0_0 = arith.constant 0 : index
    %0 = vector.load %arg1[%c0, %c0_0] : memref<2x256xf32, #tpu.memory_space<vmem>>, vector<2x256xf32>
    %cst = arith.constant 0.000000e+00 : f32
    %1 = vector.broadcast %cst : f32 to vector<2x256xf32>
    %2 = arith.maximumf %0, %1 : vector<2x256xf32>
    %3 = arith.truncf %2 : vector<2x256xf32> to vector<2x256xbf16>
    %c0_1 = arith.constant 0 : index
    %c0_2 = arith.constant 0 : index
    %4 = vector.load %arg2[%c0_1, %c0_2] : memref<256x256xbf16, #tpu.memory_space<vmem>>, vector<256x256xbf16>
    %cst_3 = arith.constant dense<0.000000e+00> : vector<2x256xf32>
    %5 = tpu.matmul %3, %4, %cst_3 {dimension_numbers = #tpu.dot_dimension_numbers<[1], [0], [0], [1], [0, 0, 1, 1], [], []>} : vector<2x256xbf16>, vector<256x256xbf16>, vector<2x256xf32> -> vector<2x256xf32>
    %c0_4 = arith.constant 0 : index
    %c0_5 = arith.constant 0 : index
    %6 = vector.load %arg3[%c0_4, %c0_5] : memref<1x256xf32, #tpu.memory_space<vmem>>, vector<1x256xf32>
    %7 = vector.broadcast %6 : vector<1x256xf32> to vector<2x256xf32>
    %8 = arith.addf %5, %7 : vector<2x256xf32>
    %cst_6 = arith.constant 0.000000e+00 : f32
    %9 = vector.broadcast %cst_6 : f32 to vector<2x256xf32>
    %10 = arith.maximumf %8, %9 : vector<2x256xf32>
    %11 = arith.truncf %10 : vector<2x256xf32> to vector<2x256xbf16>
    %c0_7 = arith.constant 0 : index
    %c0_8 = arith.constant 0 : index
    %12 = vector.load %arg4[%c0_7, %c0_8] : memref<256x128xbf16, #tpu.memory_space<vmem>>, vector<256x128xbf16>
    %cst_9 = arith.constant dense<0.000000e+00> : vector<2x128xf32>
    %13 = tpu.matmul %11, %12, %cst_9 {dimension_numbers = #tpu.dot_dimension_numbers<[1], [0], [0], [1], [0, 0, 1, 1], [], []>} : vector<2x256xbf16>, vector<256x128xbf16>, vector<2x128xf32> -> vector<2x128xf32>
    %c0_10 = arith.constant 0 : index
    %c0_11 = arith.constant 0 : index
    %14 = vector.load %arg5[%c0_10, %c0_11] : memref<1x128xf32, #tpu.memory_space<vmem>>, vector<1x128xf32>
    %15 = vector.broadcast %14 : vector<1x128xf32> to vector<2x128xf32>
    %16 = arith.addf %13, %15 : vector<2x128xf32>
    %c0_12 = arith.constant 0 : index
    %c0_13 = arith.constant 0 : index
    %17 = vector.load %arg6[%c0_12, %c0_13] : memref<2x128xf32, #tpu.memory_space<vmem>>, vector<2x128xf32>
    tpu.vector_store %arg6[%c0_12, %c0_13], %16 {strides = array<i32>} : memref<2x128xf32, #tpu.memory_space<vmem>>, vector<2x128xf32>,
    return
  }
  func.func @transform_0(%arg0: i32) -> (i32, i32) {
    %c0_i32 = arith.constant 0 : i32
    %c0_i32_0 = arith.constant 0 : i32
    return %arg0, %c0_i32 : i32, i32
  }
  func.func @transform_1(%arg0: i32) -> (i32, i32) {
    %c0_i32 = arith.constant 0 : i32
    %c0_i32_0 = arith.constant 0 : i32
    %c0_i32_1 = arith.constant 0 : i32
    return %c0_i32, %c0_i32_0 : i32, i32
  }
  func.func @transform_2(%arg0: i32) -> (i32, i32) {
    %c0_i32 = arith.constant 0 : i32
    %c0_i32_0 = arith.constant 0 : i32
    %c0_i32_1 = arith.constant 0 : i32
    return %c0_i32, %c0_i32_0 : i32, i32
  }
  func.func @transform_3(%arg0: i32) -> (i32, i32) {
    %c0_i32 = arith.constant 0 : i32
    %c0_i32_0 = arith.constant 0 : i32
    %c0_i32_1 = arith.constant 0 : i32
    return %c0_i32, %c0_i32_0 : i32, i32
  }
  func.func @transform_4(%arg0: i32) -> (i32, i32) {
    %c0_i32 = arith.constant 0 : i32
    %c0_i32_0 = arith.constant 0 : i32
    %c0_i32_1 = arith.constant 0 : i32
    return %c0_i32, %c0_i32_0 : i32, i32
  }
  func.func @transform_5(%arg0: i32) -> (i32, i32) {
    %c0_i32 = arith.constant 0 : i32
    %c0_i32_0 = arith.constant 0 : i32
    return %arg0, %c0_i32 : i32, i32
  }
}

</mosaic_0001>

<llo_original>
// kernel: tpu_custom_call.1
$region0: #{tpu_custom_call.1}
  #allocation0 [shape = 'u32[]', space=smem, size = 0x4, offset = 0x4, fixed_abs, tag = 'smem constant byte address 0x4 - core index']
  #allocation1 [shape = 'u32[72,128]{1,0:T(1,128)}', space=vmem, size = 0x9000, scoped, tag = 'internal scratch']
  %s0 = inlined_call_operand.hbm [shape: f32[2,256], index: 0, kind: input, shape index: {}]
  %s1 = inlined_call_operand.hbm [shape: bf16[256,256], index: 1, kind: input, shape index: {}]
  %s2 = inlined_call_operand.hbm [shape: f32[1,256], index: 2, kind: input, shape index: {}]
  %s3 = inlined_call_operand.hbm [shape: bf16[256,128], index: 3, kind: input, shape index: {}]
  %s4 = inlined_call_operand.vmem [shape: f32[1,128], index: 4, kind: input, shape index: {}]
  %s5 = inlined_call_operand.hbm [shape: f32[2,128], index: 5, kind: output, shape index: {}]
  %s6 = sld [smem:[#allocation0]]
  $region46: #{tpu_custom_call.1} parent=0
    _
  %s8 = ssub.s32 1, %s6
  %s9 = scalar_select 0, %s8, %s6
  $region1: #{tpu_custom_call.1} parent=0
    #allocation2 [shape = 'u8[2048]{0}', space=vmem, size = 0x800, scoped, tag = 'input window, operand 0, single buffered']
    #allocation3 [shape = 's32[1]{0}', space=sflag, size = 0x4, scoped, tag = 'scoped memory for tpu_custom_call.1']
    #allocation4 [shape = 's32[1]{0}', space=sflag, size = 0x4, scoped, tag = 'scoped memory for tpu_custom_call.1']
    #allocation5 [shape = 'u8[131072]{0}', space=vmem, size = 0x20000, scoped, tag = 'input window, operand 1, single buffered']
    #allocation6 [shape = 's32[1]{0}', space=sflag, size = 0x4, scoped, tag = 'scoped memory for tpu_custom_call.1']
    #allocation7 [shape = 'u8[1024]{0}', space=vmem, size = 0x400, scoped, tag = 'input window, operand 2, single buffered']
    #allocation8 [shape = 'u8[65536]{0}', space=vmem, size = 0x10000, scoped, tag = 'input window, operand 3, single buffered']
    #allocation9 [shape = 's32[1]{0}', space=sflag, size = 0x4, scoped, tag = 'scoped memory for tpu_custom_call.1']
    #allocation10 [shape = 'u8[1024]{0}', space=vmem, size = 0x400, scoped, tag = 'output window, operand 0, single buffered']
    %10 = vsyncpa [#allocation3], 0
    %11 = vsyncpa [#allocation6], 0
    %12 = vsyncpa [#allocation9], 0
    %13 = vsyncpa [#allocation4], 0
    // Predicated region
    $region2: #{tpu_custom_call.1} parent=1 // pred_check
      _
    $region3: #{tpu_custom_call.1} parent=1 // pred_check_branch
      %15 = sbr.rel (0) target = $region5
    $region4: #{tpu_custom_call.1} parent=1 // pred_region
      %17 = vsyncadd [#allocation3], 0
      %s19 = sshll.u32 %s0, 4
      %s20 = int_to_ptr.hbm [resolvable:$true] %s19
      %s21 = sshll.u32 [#allocation2], 4
      %s22 = int_to_ptr.vmem [resolvable:$true] %s21
      %24 = dma.hbm_to_vmem [thread:$0]  %s20, 64, %s22, [#allocation3]
    $region5: #{tpu_custom_call.1} parent=1 // pred_fallthru
      _
    // Predicated region
    $region6: #{tpu_custom_call.1} parent=1 // pred_check
      _
    $region7: #{tpu_custom_call.1} parent=1 // pred_check_branch
      %26 = sbr.rel (0) target = $region9
    $region8: #{tpu_custom_call.1} parent=1 // pred_region
      %28 = vsyncadd [#allocation6], 0
      %s29 = sshll.u32 %s1, 4
      %s30 = int_to_ptr.hbm [resolvable:$true] %s29
      %s31 = sshll.u32 [#allocation5], 4
      %s32 = int_to_ptr.vmem [resolvable:$true] %s31
      %37 = dma.hbm_to_vmem [thread:$0]  %s30, 4096, %s32, [#allocation6], 128, 128, 8
    $region9: #{tpu_custom_call.1} parent=1 // pred_fallthru
      _
    // Predicated region
    $region10: #{tpu_custom_call.1} parent=1 // pred_check
      _
    $region11: #{tpu_custom_call.1} parent=1 // pred_check_branch
      %39 = sbr.rel (0) target = $region13
    $region12: #{tpu_custom_call.1} parent=1 // pred_region
      %41 = vsyncadd [#allocation6], 0
      %s43 = sshll.u32 %s2, 4
      %s44 = int_to_ptr.hbm [resolvable:$true] %s43
      %s45 = sshll.u32 [#allocation7], 4
      %s46 = int_to_ptr.vmem [resolvable:$true] %s45
      %48 = dma.hbm_to_vmem [thread:$0]  %s44, 32, %s46, [#allocation6]
    $region13: #{tpu_custom_call.1} parent=1 // pred_fallthru
      _
    // Predicated region
    $region14: #{tpu_custom_call.1} parent=1 // pred_check
      _
    $region15: #{tpu_custom_call.1} parent=1 // pred_check_branch
      %50 = sbr.rel (0) target = $region17
    $region16: #{tpu_custom_call.1} parent=1 // pred_region
      %52 = vsyncadd [#allocation9], 0
      %s53 = sshll.u32 %s3, 4
      %s54 = int_to_ptr.hbm [resolvable:$true] %s53
      %s55 = sshll.u32 [#allocation8], 4
      %s56 = int_to_ptr.vmem [resolvable:$true] %s55
      %61 = dma.hbm_to_vmem [thread:$0]  %s54, 2048, %s56, [#allocation9], 64, 64, 4
    $region17: #{tpu_custom_call.1} parent=1 // pred_fallthru
      _
    // Predicated region
    $region18: #{tpu_custom_call.1} parent=1 // pred_check
      _
    $region19: #{tpu_custom_call.1} parent=1 // pred_check_branch
      %63 = sbr.rel (0) target = $region21
    $region20: #{tpu_custom_call.1} parent=1 // pred_region
      _
    $region21: #{tpu_custom_call.1} parent=1 // pred_fallthru
      _
    // Predicated region
    $region22: #{tpu_custom_call.1} parent=1 // pred_check
      _
    $region23: #{tpu_custom_call.1} parent=1 // pred_check_branch
      %65 = sbr.rel (0) target = $region25
    $region24: #{tpu_custom_call.1} parent=1 // pred_region
      %67 = dma.done [#allocation3], 64
    $region25: #{tpu_custom_call.1} parent=1 // pred_fallthru
      _
    // Predicated region
    $region26: #{tpu_custom_call.1} parent=1 // pred_check
      _
    $region27: #{tpu_custom_call.1} parent=1 // pred_check_branch
      %69 = sbr.rel (0) target = $region29
    $region28: #{tpu_custom_call.1} parent=1 // pred_region
      %71 = dma.done [#allocation6], 4096
    $region29: #{tpu_custom_call.1} parent=1 // pred_fallthru
      _
    // Predicated region
    $region30: #{tpu_custom_call.1} parent=1 // pred_check
      _
    $region31: #{tpu_custom_call.1} parent=1 // pred_check_branch
      %73 = sbr.rel (0) target = $region33
    $region32: #{tpu_custom_call.1} parent=1 // pred_region
      %75 = dma.done [#allocation6], 32
    $region33: #{tpu_custom_call.1} parent=1 // pred_fallthru
      _
    // Predicated region
    $region34: #{tpu_custom_call.1} parent=1 // pred_check
      _
    $region35: #{tpu_custom_call.1} parent=1 // pred_check_branch
      %77 = sbr.rel (0) target = $region37
    $region36: #{tpu_custom_call.1} parent=1 // pred_region
      %79 = dma.done [#allocation9], 2048
    $region37: #{tpu_custom_call.1} parent=1 // pred_fallthru
      _
    %v80 = vld [vmem:[#allocation2] sm:$0xf]
    %v81 = vmax.f32 %v80, 0.0
    %83 = vst [vmem:[#allocation1] ss:$4 sm:$0xff] %v81
    %v84 = vld.sshfl [vmem:[#allocation1] sm:$0xff pattern:$0x73625140]
    %v85 = vld.sshfl [vmem:[#allocation1 + $0x8] sm:$0xff pattern:$0x73625140]
    %v88 = vpack.c.bf16 %v84, %v84
    %v89 = vpack.c.bf16 %v85, %v85
    %v90 = vld [vmem:[#allocation5] sm:$0xff]
    %v91 = vld [vmem:[#allocation5 + $0x8] sm:$0xff]
    %v92 = vld [vmem:[#allocation5 + $0x10] sm:$0xff]
    %v93 = vld [vmem:[#allocation5 + $0x18] sm:$0xff]
    %v94 = vld [vmem:[#allocation5 + $0x20] sm:$0xff]
    %v95 = vld [vmem:[#allocation5 + $0x28] sm:$0xff]
    %v96 = vld [vmem:[#allocation5 + $0x30] sm:$0xff]
    %v97 = vld [vmem:[#allocation5 + $0x38] sm:$0xff]
    %v98 = vld [vmem:[#allocation5 + $0x40] sm:$0xff]
    %v99 = vld [vmem:[#allocation5 + $0x48] sm:$0xff]
    %v100 = vld [vmem:[#allocation5 + $0x50] sm:$0xff]
    %v101 = vld [vmem:[#allocation5 + $0x58] sm:$0xff]
    %v102 = vld [vmem:[#allocation5 + $0x60] sm:$0xff]
    %v103 = vld [vmem:[#allocation5 + $0x68] sm:$0xff]
    %v104 = vld [vmem:[#allocation5 + $0x70] sm:$0xff]
    %v105 = vld [vmem:[#allocation5 + $0x78] sm:$0xff]
    %v106 = vld [vmem:[#allocation5 + $0x80] sm:$0xff]
    %v107 = vld [vmem:[#allocation5 + $0x88] sm:$0xff]
    %v108 = vld [vmem:[#allocation5 + $0x90] sm:$0xff]
    %v109 = vld [vmem:[#allocation5 + $0x98] sm:$0xff]
    %v110 = vld [vmem:[#allocation5 + $0xa0] sm:$0xff]
    %v111 = vld [vmem:[#allocation5 + $0xa8] sm:$0xff]
    %v112 = vld [vmem:[#allocation5 + $0xb0] sm:$0xff]
    %v113 = vld [vmem:[#allocation5 + $0xb8] sm:$0xff]
    %v114 = vld [vmem:[#allocation5 + $0xc0] sm:$0xff]
    %v115 = vld [vmem:[#allocation5 + $0xc8] sm:$0xff]
    %v116 = vld [vmem:[#allocation5 + $0xd0] sm:$0xff]
    %v117 = vld [vmem:[#allocation5 + $0xd8] sm:$0xff]
    %v118 = vld [vmem:[#allocation5 + $0xe0] sm:$0xff]
    %v119 = vld [vmem:[#allocation5 + $0xe8] sm:$0xff]
    %v120 = vld [vmem:[#allocation5 + $0xf0] sm:$0xff]
    %v121 = vld [vmem:[#allocation5 + $0xf8] sm:$0xff]
    %v122 = vld [vmem:[#allocation7] sm:$0x3]
    %v124 = vperm.slane %v122, 0
    %v125 = vperm.slane %v122, 1
    %v160 = vunpack.c.l.b16 %v90
    %v161 = vunpack.c.h.b16 %v90
    %v162 = vunpack.c.l.b16 %v91
    %v163 = vunpack.c.h.b16 %v91
    %v164 = vunpack.c.l.b16 %v92
    %v165 = vunpack.c.h.b16 %v92
    %v166 = vunpack.c.l.b16 %v93
    %v167 = vunpack.c.h.b16 %v93
    %v168 = vunpack.c.l.b16 %v94
    %v169 = vunpack.c.h.b16 %v94
    %v170 = vunpack.c.l.b16 %v95
    %v171 = vunpack.c.h.b16 %v95
    %v172 = vunpack.c.l.b16 %v96
    %v173 = vunpack.c.h.b16 %v96
    %v174 = vunpack.c.l.b16 %v97
    %v175 = vunpack.c.h.b16 %v97
    %v176 = vunpack.c.l.b16 %v98
    %v177 = vunpack.c.h.b16 %v98
    %v178 = vunpack.c.l.b16 %v99
    %v179 = vunpack.c.h.b16 %v99
    %v180 = vunpack.c.l.b16 %v100
    %v181 = vunpack.c.h.b16 %v100
    %v182 = vunpack.c.l.b16 %v101
    %v183 = vunpack.c.h.b16 %v101
    %v184 = vunpack.c.l.b16 %v102
    %v185 = vunpack.c.h.b16 %v102
    %v186 = vunpack.c.l.b16 %v103
    %v187 = vunpack.c.h.b16 %v103
    %v188 = vunpack.c.l.b16 %v104
    %v189 = vunpack.c.h.b16 %v104
    %v190 = vunpack.c.l.b16 %v105
    %v191 = vunpack.c.h.b16 %v105
    %v192 = vunpack.c.l.b16 %v106
    %v193 = vunpack.c.h.b16 %v106
    %v194 = vunpack.c.l.b16 %v107
    %v195 = vunpack.c.h.b16 %v107
    %v196 = vunpack.c.l.b16 %v108
    %v197 = vunpack.c.h.b16 %v108
    %v198 = vunpack.c.l.b16 %v109
    %v199 = vunpack.c.h.b16 %v109
    %v200 = vunpack.c.l.b16 %v110
    %v201 = vunpack.c.h.b16 %v110
    %v202 = vunpack.c.l.b16 %v111
    %v203 = vunpack.c.h.b16 %v111
    %v204 = vunpack.c.l.b16 %v112
    %v205 = vunpack.c.h.b16 %v112
    %v206 = vunpack.c.l.b16 %v113
    %v207 = vunpack.c.h.b16 %v113
    %v208 = vunpack.c.l.b16 %v114
    %v209 = vunpack.c.h.b16 %v114
    %v210 = vunpack.c.l.b16 %v115
    %v211 = vunpack.c.h.b16 %v115
    %v212 = vunpack.c.l.b16 %v116
    %v213 = vunpack.c.h.b16 %v116
    %v214 = vunpack.c.l.b16 %v117
    %v215 = vunpack.c.h.b16 %v117
    %v216 = vunpack.c.l.b16 %v118
    %v217 = vunpack.c.h.b16 %v118
    %v218 = vunpack.c.l.b16 %v119
    %v219 = vunpack.c.h.b16 %v119
    %v220 = vunpack.c.l.b16 %v120
    %v221 = vunpack.c.h.b16 %v120
    %v222 = vunpack.c.l.b16 %v121
    %v223 = vunpack.c.h.b16 %v121
    %v224 = vpack.c.b16 %v162, %v160
    %v225 = vpack.c.b16 %v163, %v161
    %v226 = vpack.c.b16 %v166, %v164
    %v227 = vpack.c.b16 %v167, %v165
    %v228 = vpack.c.b16 %v170, %v168
    %v229 = vpack.c.b16 %v171, %v169
    %v230 = vpack.c.b16 %v174, %v172
    %v231 = vpack.c.b16 %v175, %v173
    %v232 = vpack.c.b16 %v178, %v176
    %v233 = vpack.c.b16 %v179, %v177
    %v234 = vpack.c.b16 %v182, %v180
    %v235 = vpack.c.b16 %v183, %v181
    %v236 = vpack.c.b16 %v186, %v184
    %v237 = vpack.c.b16 %v187, %v185
    %v238 = vpack.c.b16 %v190, %v188
    %v239 = vpack.c.b16 %v191, %v189
    %v240 = vpack.c.b16 %v194, %v192
    %v241 = vpack.c.b16 %v195, %v193
    %v242 = vpack.c.b16 %v198, %v196
    %v243 = vpack.c.b16 %v199, %v197
    %v244 = vpack.c.b16 %v202, %v200
    %v245 = vpack.c.b16 %v203, %v201
    %v246 = vpack.c.b16 %v206, %v204
    %v247 = vpack.c.b16 %v207, %v205
    %v248 = vpack.c.b16 %v210, %v208
    %v249 = vpack.c.b16 %v211, %v209
    %v250 = vpack.c.b16 %v214, %v212
    %v251 = vpack.c.b16 %v215, %v213
    %v252 = vpack.c.b16 %v218, %v216
    %v253 = vpack.c.b16 %v219, %v217
    %v254 = vpack.c.b16 %v222, %v220
    %v255 = vpack.c.b16 %v223, %v221
    %288 = vmatpush.bf16.msra.mxu0 %v238
    %289 = vmatpush.bf16.msra.mxu0 %v236
    %290 = vmatpush.bf16.msra.mxu0 %v234
    %291 = vmatpush.bf16.msra.mxu0 %v232
    %292 = vmatpush.bf16.msra.mxu0 %v230
    %293 = vmatpush.bf16.msra.mxu0 %v228
    %294 = vmatpush.bf16.msra.mxu0 %v226
    %295 = vmatpush.bf16.msra.mxu0 %v224
    %296 = vmatmul.bf16.gmra.mxu0 %v88
    %v297 = vpop.f32.mrf.mxu0
    %v298 = vadd.f32 %v124, %v297
    %v299 = vpop.f32.mrf.mxu0
    %300 = vdwg.mxu0
    %301 = vmatpush.bf16.msra.mxu0 %v254
    %302 = vmatpush.bf16.msra.mxu0 %v252
    %303 = vmatpush.bf16.msra.mxu0 %v250
    %304 = vmatpush.bf16.msra.mxu0 %v248
    %305 = vmatpush.bf16.msra.mxu0 %v246
    %306 = vmatpush.bf16.msra.mxu0 %v244
    %307 = vmatpush.bf16.msra.mxu0 %v242
    %308 = vmatpush.bf16.msra.mxu0 %v240
    %309 = vmatmul.bf16.gmra.mxu0 %v89
    %v310 = vpop.f32.mrf.mxu0
    %v311 = vadd.f32 %v298, %v310
    %v312 = vpop.f32.mrf.mxu0
    %313 = vdwg.mxu0
    %314 = vmatpush.bf16.msra.mxu0 %v239
    %315 = vmatpush.bf16.msra.mxu0 %v237
    %316 = vmatpush.bf16.msra.mxu0 %v235
    %317 = vmatpush.bf16.msra.mxu0 %v233
    %318 = vmatpush.bf16.msra.mxu0 %v231
    %319 = vmatpush.bf16.msra.mxu0 %v229
    %320 = vmatpush.bf16.msra.mxu0 %v227
    %321 = vmatpush.bf16.msra.mxu0 %v225
    %322 = vmatmul.bf16.gmra.mxu0 %v88
    %v323 = vpop.f32.mrf.mxu0
    %v324 = vadd.f32 %v125, %v323
    %v325 = vpop.f32.mrf.mxu0
    %326 = vdwg.mxu0
    %327 = vmatpush.bf16.msra.mxu0 %v255
    %328 = vmatpush.bf16.msra.mxu0 %v253
    %329 = vmatpush.bf16.msra.mxu0 %v251
    %330 = vmatpush.bf16.msra.mxu0 %v249
    %331 = vmatpush.bf16.msra.mxu0 %v247
    %332 = vmatpush.bf16.msra.mxu0 %v245
    %333 = vmatpush.bf16.msra.mxu0 %v243
    %334 = vmatpush.bf16.msra.mxu0 %v241
    %335 = vmatmul.bf16.gmra.mxu0 %v89
    %v336 = vpop.f32.mrf.mxu0
    %v337 = vadd.f32 %v324, %v336
    %v338 = vpop.f32.mrf.mxu0
    %339 = vdwg.mxu0
    %v340 = vmax.f32 %v311, 0.0
    %v341 = vmax.f32 %v337, 0.0
    %v342 = vpack.c.bf16 %v340, %v340
    %v343 = vpack.c.bf16 %v341, %v341
    %v344 = vld [vmem:[#allocation8] sm:$0xf]
    %v345 = vld [vmem:[#allocation8 + $0x4] sm:$0xf]
    %v346 = vld [vmem:[#allocation8 + $0x8] sm:$0xf]
    %v347 = vld [vmem:[#allocation8 + $0xc] sm:$0xf]
    %v348 = vld [vmem:[#allocation8 + $0x10] sm:$0xf]
    %v349 = vld [vmem:[#allocation8 + $0x14] sm:$0xf]
    %v350 = vld [vmem:[#allocation8 + $0x18] sm:$0xf]
    %v351 = vld [vmem:[#allocation8 + $0x1c] sm:$0xf]
    %v352 = vld [vmem:[#allocation8 + $0x20] sm:$0xf]
    %v353 = vld [vmem:[#allocation8 + $0x24] sm:$0xf]
    %v354 = vld [vmem:[#allocation8 + $0x28] sm:$0xf]
    %v355 = vld [vmem:[#allocation8 + $0x2c] sm:$0xf]
    %v356 = vld [vmem:[#allocation8 + $0x30] sm:$0xf]
    %v357 = vld [vmem:[#allocation8 + $0x34] sm:$0xf]
    %v358 = vld [vmem:[#allocation8 + $0x38] sm:$0xf]
    %v359 = vld [vmem:[#allocation8 + $0x3c] sm:$0xf]
    %v360 = vld [vmem:[#allocation8 + $0x40] sm:$0xf]
    %v361 = vld [vmem:[#allocation8 + $0x44] sm:$0xf]
    %v362 = vld [vmem:[#allocation8 + $0x48] sm:$0xf]
    %v363 = vld [vmem:[#allocation8 + $0x4c] sm:$0xf]
    %v364 = vld [vmem:[#allocation8 + $0x50] sm:$0xf]
    %v365 = vld [vmem:[#allocation8 + $0x54] sm:$0xf]
    %v366 = vld [vmem:[#allocation8 + $0x58] sm:$0xf]
    %v367 = vld [vmem:[#allocation8 + $0x5c] sm:$0xf]
    %v368 = vld [vmem:[#allocation8 + $0x60] sm:$0xf]
    %v369 = vld [vmem:[#allocation8 + $0x64] sm:$0xf]
    %v370 = vld [vmem:[#allocation8 + $0x68] sm:$0xf]
    %v371 = vld [vmem:[#allocation8 + $0x6c] sm:$0xf]
    %v372 = vld [vmem:[#allocation8 + $0x70] sm:$0xf]
    %v373 = vld [vmem:[#allocation8 + $0x74] sm:$0xf]
    %v374 = vld [vmem:[#allocation8 + $0x78] sm:$0xf]
    %v375 = vld [vmem:[#allocation8 + $0x7c] sm:$0xf]
    %v376 = vld [vmem:[%s4] sm:$0x1]
    %v378 = vperm.slane %v376, 0
    %v412 = vunpack.c.l.b16 %v344
    %v413 = vunpack.c.l.b16 %v345
    %v414 = vunpack.c.l.b16 %v346
    %v415 = vunpack.c.l.b16 %v347
    %v416 = vunpack.c.l.b16 %v348
    %v417 = vunpack.c.l.b16 %v349
    %v418 = vunpack.c.l.b16 %v350
    %v419 = vunpack.c.l.b16 %v351
    %v420 = vunpack.c.l.b16 %v352
    %v421 = vunpack.c.l.b16 %v353
    %v422 = vunpack.c.l.b16 %v354
    %v423 = vunpack.c.l.b16 %v355
    %v424 = vunpack.c.l.b16 %v356
    %v425 = vunpack.c.l.b16 %v357
    %v426 = vunpack.c.l.b16 %v358
    %v427 = vunpack.c.l.b16 %v359
    %v428 = vunpack.c.l.b16 %v360
    %v429 = vunpack.c.l.b16 %v361
    %v430 = vunpack.c.l.b16 %v362
    %v431 = vunpack.c.l.b16 %v363
    %v432 = vunpack.c.l.b16 %v364
    %v433 = vunpack.c.l.b16 %v365
    %v434 = vunpack.c.l.b16 %v366
    %v435 = vunpack.c.l.b16 %v367
    %v436 = vunpack.c.l.b16 %v368
    %v437 = vunpack.c.l.b16 %v369
    %v438 = vunpack.c.l.b16 %v370
    %v439 = vunpack.c.l.b16 %v371
    %v440 = vunpack.c.l.b16 %v372
    %v441 = vunpack.c.l.b16 %v373
    %v442 = vunpack.c.l.b16 %v374
    %v443 = vunpack.c.l.b16 %v375
    %v444 = vpack.c.b16 %v413, %v412
    %v445 = vpack.c.b16 %v415, %v414
    %v446 = vpack.c.b16 %v417, %v416
    %v447 = vpack.c.b16 %v419, %v418
    %v448 = vpack.c.b16 %v421, %v420
    %v449 = vpack.c.b16 %v423, %v422
    %v450 = vpack.c.b16 %v425, %v424
    %v451 = vpack.c.b16 %v427, %v426
    %v452 = vpack.c.b16 %v429, %v428
    %v453 = vpack.c.b16 %v431, %v430
    %v454 = vpack.c.b16 %v433, %v432
    %v455 = vpack.c.b16 %v435, %v434
    %v456 = vpack.c.b16 %v437, %v436
    %v457 = vpack.c.b16 %v439, %v438
    %v458 = vpack.c.b16 %v441, %v440
    %v459 = vpack.c.b16 %v443, %v442
    %476 = vmatpush.bf16.msra.mxu0 %v451
    %477 = vmatpush.bf16.msra.mxu0 %v450
    %478 = vmatpush.bf16.msra.mxu0 %v449
    %479 = vmatpush.bf16.msra.mxu0 %v448
    %480 = vmatpush.bf16.msra.mxu0 %v447
    %481 = vmatpush.bf16.msra.mxu0 %v446
    %482 = vmatpush.bf16.msra.mxu0 %v445
    %483 = vmatpush.bf16.msra.mxu0 %v444
    %484 = vmatmul.bf16.gmra.mxu0 %v342
    %v485 = vpop.f32.mrf.mxu0
    %v486 = vadd.f32 %v378, %v485
    %v487 = vpop.f32.mrf.mxu0
    %488 = vdwg.mxu0
    %489 = vmatpush.bf16.msra.mxu0 %v459
    %490 = vmatpush.bf16.msra.mxu0 %v458
    %491 = vmatpush.bf16.msra.mxu0 %v457
    %492 = vmatpush.bf16.msra.mxu0 %v456
    %493 = vmatpush.bf16.msra.mxu0 %v455
    %494 = vmatpush.bf16.msra.mxu0 %v454
    %495 = vmatpush.bf16.msra.mxu0 %v453
    %496 = vmatpush.bf16.msra.mxu0 %v452
    %497 = vmatmul.bf16.gmra.mxu0 %v343
    %v498 = vpop.f32.mrf.mxu0
    %v499 = vadd.f32 %v486, %v498
    %v500 = vpop.f32.mrf.mxu0
    %501 = vdwg.mxu0
    %502 = vst [vmem:[#allocation10] sm:$0x3] %v499
    // Predicated region
    $region38: #{tpu_custom_call.1} parent=1 // pred_check
      _
    $region39: #{tpu_custom_call.1} parent=1 // pred_check_branch
      %504 = sbr.rel (0) target = $region41
    $region40: #{tpu_custom_call.1} parent=1 // pred_region
      %506 = vsyncadd [#allocation4], 0
      %s508 = sshll.u32 [#allocation10], 4
      %s509 = int_to_ptr.vmem [resolvable:$true] %s508
      %s510 = sshll.u32 %s5, 4
      %s511 = int_to_ptr.hbm [resolvable:$true] %s510
      %513 = dma.vmem_to_hbm [thread:$0]  %s509, 32, %s511, [#allocation4]
    $region41: #{tpu_custom_call.1} parent=1 // pred_fallthru
      _
    // Predicated region
    $region42: #{tpu_custom_call.1} parent=1 // pred_check
      _
    $region43: #{tpu_custom_call.1} parent=1 // pred_check_branch
      %515 = sbr.rel (0) target = $region45
    $region44: #{tpu_custom_call.1} parent=1 // pred_region
      %517 = dma.done [#allocation4], 32
    $region45: #{tpu_custom_call.1} parent=1 // pred_fallthru
      _
    %518 = vsyncpa [#allocation3], 1
    %519 = vsyncpa [#allocation6], 1
    %520 = vsyncpa [#allocation9], 1
    %521 = vsyncpa [#allocation4], 1

</llo_original>
